<compile_context>
chip_gen: v7x
topology: tpu7x:2x2x1
jax: 0.10.0
libtpu: 0.0.40
codegen_flags: <defaults>
</compile_context>

<pallas_src>
import jax
import jax.numpy as jnp
from jax.experimental import pallas as pl
from jax.experimental.pallas import tpu as pltpu


def _fused_im2col_matmul_kernel(p_ref, w_ref, o_ref):
    # p_ref: (Bblk, K_pad, Mblk)  im2col patches, K on sublanes, lane-dense Mblk
    # w_ref: (Cout, K_pad)        fused block-diagonal weight, bias folded in
    # o_ref: (Bblk, Cout, Mblk)   channel-major output (lane dim = Mblk >= 128)
    w = w_ref[...]
    for b in range(p_ref.shape[0]):  # static, small batch block
        o_ref[b] = jnp.dot(
            w, p_ref[b], preferred_element_type=jnp.float32
        ).astype(o_ref.dtype)


def _pick_m_block(m, cap=4096):
    """Largest multiple of 128 dividing m and <= cap; else whole m."""
    if m <= cap:
        return m
    d = cap - (cap % 128)
    while d >= 128:
        if m % d == 0 and d % 128 == 0:
            return d
        d -= 128
    return m


def fused_conv3x3_nchw(x_nchw, w_mat):
    """Fused 3x3 stride-1 same-padding conv, NCHW in / NCHW out.

    x_nchw: (N, Cin, H, W); w_mat: (Cout, K_pad) with K ordered (kh,kw,cin),
    bias folded into column 9*Cin (matching the 'ones' patch row)."""
    N, Cin, H, W = x_nchw.shape
    Cout, K_pad = w_mat.shape
    M = H * W
    K = 9 * Cin

    # --- im2col in the wrapper (K-major -> kernel output is channel-major) ---
    # TODO(synk): at real MRI resolutions the 9x im2col HBM blowup could be
    # avoided with in-kernel per-tap DMA; at these sizes this is the robust path.
    xp = jnp.pad(x_nchw, ((0, 0), (0, 0), (1, 1), (1, 1)))
    taps = [xp[:, :, kh:kh + H, kw:kw + W]           # (N, Cin, H, W) per tap
            for kh in range(3) for kw in range(3)]
    p = jnp.stack(taps, axis=1).reshape(N, K, M)     # (N, 9*Cin, H*W)
    ones = jnp.ones((N, 1, M), p.dtype)              # bias row (weight col = bias)
    pad = K_pad - K - 1
    p = jnp.concatenate(
        [p, ones, jnp.zeros((N, pad, M), p.dtype)], axis=1)  # (N, K_pad, M)

    # --- grid: >=2 parallel batch steps when possible (v7x), few big steps ---
    if N >= 2 and N % 2 == 0:
        n_steps, b_blk = 2, N // 2
    else:
        n_steps, b_blk = N, 1
    m_blk = _pick_m_block(M)
    m_steps = M // m_blk

    y = pl.pallas_call(
        _fused_im2col_matmul_kernel,
        out_shape=jax.ShapeDtypeStruct((N, Cout, M), x_nchw.dtype),
        grid_spec=pltpu.PrefetchScalarGridSpec(
            num_scalar_prefetch=0,
            grid=(n_steps, m_steps),
            in_specs=[
                pl.BlockSpec((b_blk, K_pad, m_blk), lambda n, m: (n, 0, m)),
                pl.BlockSpec((Cout, K_pad), lambda n, m: (0, 0)),
            ],
            out_specs=pl.BlockSpec((b_blk, Cout, m_blk), lambda n, m: (n, 0, m)),
        ),
        compiler_params=pltpu.CompilerParams(
            dimension_semantics=("parallel", "parallel")),
    )(p, w_mat)

    # Channel-major kernel output -> free reshape, NO epilogue transpose.
    return y.reshape(N, Cout, H, W)


def init_conv_params(key, cin, cout, k=3):
    """Deterministic PyTorch-style init. Returns OIHW weight + bias."""
    kw_, kb = jax.random.split(key)
    fan_in = cin * k * k
    bound = 1.0 / jnp.sqrt(fan_in)
    w_oihw = jax.random.uniform(kw_, (cout, cin, k, k), jnp.float32, -bound, bound)
    bias = jax.random.uniform(kb, (cout,), jnp.float32, -bound, bound)
    return w_oihw, bias


class ModelInputPallas:
    """Pallas equivalent of CNTSegV2_final.model_input: 4 independent 3x3 convs,
    executed as one fused block-diagonal im2col matmul (off-diagonal weights are
    exact zeros, so the branches stay independent)."""

    def __init__(self, in_t2, in_fa, in_dec, in_peaks, filters_base, key):
        ks = jax.random.split(key, 4)
        self.filters_base = filters_base
        self.in_channels = (in_t2, in_fa, in_dec, in_peaks)
        self.t2_w, self.t2_b = init_conv_params(ks[0], in_t2, filters_base)
        self.fa_w, self.fa_b = init_conv_params(ks[1], in_fa, filters_base)
        self.dec_w, self.dec_b = init_conv_params(ks[2], in_dec, filters_base)
        self.peaks_w, self.peaks_b = init_conv_params(ks[3], in_peaks, filters_base)

        cin_total = sum(self.in_channels)
        cout_total = 4 * filters_base

        # Fused block-diagonal HWIO weight (3,3,Cin_total,Cout_total).
        w_fused = jnp.zeros((3, 3, cin_total, cout_total), jnp.float32)
        row = 0
        for idx, (w_oihw, cin) in enumerate(
                zip((self.t2_w, self.fa_w, self.dec_w, self.peaks_w),
                    self.in_channels)):
            col = idx * filters_base
            w_hwio = jnp.transpose(w_oihw, (2, 3, 1, 0))
            w_fused = w_fused.at[:, :, row:row + cin,
                                 col:col + filters_base].set(w_hwio)
            row += cin
        b_fused = jnp.concatenate(
            [self.t2_b, self.fa_b, self.dec_b, self.peaks_b], axis=0)

        # (Cout, K_pad) matmul weight; K ordered (kh, kw, cin) to match the
        # im2col patch ordering; bias folded into column K (ones patch row).
        K = 9 * cin_total
        K_pad = max(128, ((K + 1 + 127) // 128) * 128)
        w_flat = w_fused.reshape(K, cout_total).T          # (Cout, 9*Cin)
        w_mat = jnp.zeros((cout_total, K_pad), jnp.float32)
        w_mat = w_mat.at[:, :K].set(w_flat)
        w_mat = w_mat.at[:, K].set(b_fused)
        self.w_mat = w_mat

    def __call__(self, x_t2, x_fa, x_dec, x_peaks):
        fb = self.filters_base
        # One channel-concat in native NCHW (no NCHW->NHWC transposes at all).
        x = jnp.concatenate([x_t2, x_fa, x_dec, x_peaks], axis=1)  # (N, 14, H, W)
        y = fused_conv3x3_nchw(x, self.w_mat)                      # (N, 128, H, W)
        # Split back into the 4 modality outputs (cheap channel slices).
        return [y[:, i * fb:(i + 1) * fb] for i in range(4)]


def _ref_conv(x_nchw, w_oihw, b):
    """Pure-JAX per-branch reference (NCHW in/out), pinned to high precision."""
    y = jax.lax.conv_general_dilated(
        x_nchw, w_oihw, window_strides=(1, 1), padding="SAME",
        dimension_numbers=("NCHW", "OIHW", "NCHW"),
        precision=jax.lax.Precision.HIGHEST)
    return y + b[None, :, None, None]


if __name__ == "__main__":
    key = jax.random.PRNGKey(0)
    k_in, k_par = jax.random.split(key)

    # Small shapes consistent with the module: t2=1, fa=1, dec=3, peaks=9 channels.
    N, H, W = 2, 16, 16
    in_t2, in_fa, in_dec, in_peaks = 1, 1, 3, 9
    filters_base = 32

    ki = jax.random.split(k_in, 4)
    x_t2 = jax.random.normal(ki[0], (N, in_t2, H, W), jnp.float32)
    x_fa = jax.random.normal(ki[1], (N, in_fa, H, W), jnp.float32)
    x_dec = jax.random.normal(ki[2], (N, in_dec, H, W), jnp.float32)
    x_peaks = jax.random.normal(ki[3], (N, in_peaks, H, W), jnp.float32)

    model = ModelInputPallas(in_t2, in_fa, in_dec, in_peaks, filters_base, k_par)

    # jit the forward so the small wrapper ops (concat/pad/im2col/slices) fuse
    # into a short XLA prologue/epilogue around the single Pallas call.
    forward = jax.jit(lambda a, b, c, d: model(a, b, c, d))
    outs = forward(x_t2, x_fa, x_dec, x_peaks)
    outs = [jax.block_until_ready(o) for o in outs]

    # Correctness check against the pure-JAX per-branch convolutions.
    refs = [
        _ref_conv(x_t2, model.t2_w, model.t2_b),
        _ref_conv(x_fa, model.fa_w, model.fa_b),
        _ref_conv(x_dec, model.dec_w, model.dec_b),
        _ref_conv(x_peaks, model.peaks_w, model.peaks_b),
    ]
    for o, r in zip(outs, refs):
        assert o.shape == (N, filters_base, H, W)
        err = float(jnp.max(jnp.abs(o - r)))
        assert jnp.allclose(o, r, atol=2e-3, rtol=2e-3), f"max abs err {err}"

    print("KERNEL_OK")
</pallas_src>

<mosaic_0001>
module attributes {stable_mosaic.version = 11 : i64} {
  func.func @_fused_im2col_matmul_kernel(%arg0: i32, %arg1: i32, %arg2: memref<1x128x256xf32, #tpu.memory_space<vmem>>, %arg3: memref<128x128xf32, #tpu.memory_space<vmem>>, %arg4: memref<1x128x256xf32, #tpu.memory_space<vmem>>) attributes {dimension_semantics = [#tpu.dimension_semantics<parallel>, #tpu.dimension_semantics<parallel>], iteration_bounds = array<i64: 2, 1>, scalar_prefetch = 0 : i64, scratch_operands = 0 : i64, tpu.core_type = #tpu.core_type<tc>, window_params = [{transform_indices = @transform_0, window_bounds = array<i64: 1, 128, 256>}, {pipeline_mode = #tpu.pipeline_mode<synchronous>, transform_indices = @transform_1, window_bounds = array<i64: 128, 128>}, {transform_indices = @transform_2, window_bounds = array<i64: 1, 128, 256>}]} {
    %c0 = arith.constant 0 : index
    %c0_0 = arith.constant 0 : index
    %0 = vector.load %arg3[%c0, %c0_0] : memref<128x128xf32, #tpu.memory_space<vmem>>, vector<128x128xf32>
    %c0_1 = arith.constant 0 : index
    %c0_2 = arith.constant 0 : index
    %c0_3 = arith.constant 0 : index
    %1 = vector.load %arg2[%c0_1, %c0_2, %c0_3] : memref<1x128x256xf32, #tpu.memory_space<vmem>>, vector<1x128x256xf32>
    %2 = vector.shape_cast %1 : vector<1x128x256xf32> to vector<128x256xf32>
    %cst = arith.constant dense<0.000000e+00> : vector<128x256xf32>
    %3 = tpu.matmul %0, %2, %cst {dimension_numbers = #tpu.dot_dimension_numbers<[1], [0], [0], [1], [0, 0, 1, 1], [], []>} : vector<128x128xf32>, vector<128x256xf32>, vector<128x256xf32> -> vector<128x256xf32>
    %c0_4 = arith.constant 0 : index
    %c0_5 = arith.constant 0 : index
    %c0_6 = arith.constant 0 : index
    %4 = vector.load %arg4[%c0_4, %c0_5, %c0_6] : memref<1x128x256xf32, #tpu.memory_space<vmem>>, vector<1x128x256xf32>
    %5 = vector.shape_cast %4 : vector<1x128x256xf32> to vector<128x256xf32>
    %6 = vector.shape_cast %3 : vector<128x256xf32> to vector<1x128x256xf32>
    tpu.vector_store %arg4[%c0_4, %c0_5, %c0_6], %6 {strides = array<i32>} : memref<1x128x256xf32, #tpu.memory_space<vmem>>, vector<1x128x256xf32>,
    return
  }
  func.func @transform_0(%arg0: i32, %arg1: i32) -> (i32, i32, i32) {
    %c0_i32 = arith.constant 0 : i32
    %c0_i32_0 = arith.constant 0 : i32
    return %arg0, %c0_i32, %arg1 : i32, i32, i32
  }
  func.func @transform_1(%arg0: i32, %arg1: i32) -> (i32, i32) {
    %c0_i32 = arith.constant 0 : i32
    %c0_i32_0 = arith.constant 0 : i32
    %c0_i32_1 = arith.constant 0 : i32
    return %c0_i32, %c0_i32_0 : i32, i32
  }
  func.func @transform_2(%arg0: i32, %arg1: i32) -> (i32, i32, i32) {
    %c0_i32 = arith.constant 0 : i32
    %c0_i32_0 = arith.constant 0 : i32
    return %arg0, %c0_i32, %arg1 : i32, i32, i32
  }
}

</mosaic_0001>

<llo_original>
// kernel: _lambda_.1
$region0: #{_lambda_.1}
  #allocation0 [shape = 'u32[]', space=smem, size = 0x4, offset = 0x4, fixed_abs, tag = 'smem constant byte address 0x4 - core index']
  #allocation1 [shape = 'u32[144,128]{1,0:T(1,128)}', space=vmem, size = 0x12000, scoped, tag = 'internal scratch']
  %s0 = inlined_call_operand.vmem [shape: f32[2,128,256], index: 0, kind: input, shape index: {}]
  %s1 = inlined_call_operand.vmem [shape: f32[128,128], index: 1, kind: input, shape index: {}]
  %s2 = inlined_call_operand.vmem [shape: f32[2,128,256], index: 2, kind: output, shape index: {}]
  %s3 = sld [smem:[#allocation0]]
  $region41: #{_lambda_.1} parent=0
    _
  %s5 = ssub.s32 1, %s3
  %s6 = scalar_select 0, %s5, %s3
  loop: start=0, step=1, limit=4
  $region2: #{_lambda_.1} parent=0 // loop_pre_header
    _
  $region3: #{_lambda_.1} parent=0 // loop_header
    %s8 = sphi 0, %s12
    %p9 = scmp.ge.s32.totalorder %s8, 4
    %s15 = sphi 0, %s27
    %s16 = sphi 0, %s23
    %s17 = sphi 0, %s15
    %s18 = sphi 0, %s16
    %s19 = sphi 0, %s17
    %s20 = sphi 0, %s18
    %s32 = sphi 0, %s34
    %s35 = sphi 0, %s32
    %s36 = sphi 0, %s35
    %s52 = sphi 0, %s36
    %s56 = sphi 0, %s56
    %s58 = sphi 0, %s56
    %s59 = sphi 0, %s58
    %s73 = sphi 0, %s59
    %s81 = sphi 0, %s83
    %s84 = sphi 0, %s81
    %s85 = sphi 0, %s84
    %s101 = sphi 0, %s85
  $region4: #{_lambda_.1} parent=0 // loop_header_branch
    %11 = sbr.rel (%p9) target = $region8
  $region5: #{_lambda_.1} parent=0 // loop_body
    %s13 = ssub.s32 %s8, 1
    %s14 = ssub.s32 %s8, 2
    %s21 = sadd.s32 1, %s16
    %p22 = scmp.ge.s32.totalorder %s21, 1
    %s23 = scalar_select %p22, 0, %s21
    %s24 = sadd.s32 1, %s15
    %s25 = scalar_select %p22, %s24, %s15
    %p26 = scmp.ge.s32.totalorder %s25, 2
    %s27 = scalar_select %p26, 0, %s25
    %s28 = ssub.s32 %s15, %s27
    %s29 = ssub.s32 %s16, %s23
    %s30 = sor.u32 %s28, %s29
    %p31 = scmp.eq.s32.totalorder %s30, 0
    %s33 = sadd.s32 %s32, 1
    %s34 = scalar_select %p31, %s32, %s33
    %p37 = pneg %p31
    %p38 = scmp.eq.s32.totalorder %s8, 1
    %p39 = por %p37, %p38
    %p40 = scmp.ne.s32.totalorder %s32, %s35
    %p41 = scmp.eq.s32.totalorder %s8, 0
    %p42 = por %p40, %p41
    %p43 = scmp.ne.s32.totalorder %s32, %s35
    %p44 = scmp.eq.s32.totalorder %s13, 1
    %p45 = por %p43, %p44
    %p46 = scmp.ne.s32.totalorder %s35, %s36
    %p47 = scmp.eq.s32.totalorder %s13, 0
    %p48 = por %p46, %p47
    %p49 = scmp.ne.s32.totalorder %s35, %s36
    %p50 = scmp.eq.s32.totalorder %s14, 1
    %p51 = por %p49, %p50
    %p53 = scmp.ne.s32.totalorder %s36, %s52
    %p54 = scmp.eq.s32.totalorder %s14, 0
    %p55 = por %p53, %p54
    %s57 = sadd.s32 %s56, 1
    %p60 = scmp.eq.s32.totalorder %s8, 1
    %p61 = scmp.ne.s32.totalorder %s56, %s58
    %p62 = scmp.eq.s32.totalorder %s8, 0
    %p63 = por %p61, %p62
    %p64 = scmp.ne.s32.totalorder %s56, %s58
    %p65 = scmp.eq.s32.totalorder %s13, 1
    %p66 = por %p64, %p65
    %p67 = scmp.ne.s32.totalorder %s58, %s59
    %p68 = scmp.eq.s32.totalorder %s13, 0
    %p69 = por %p67, %p68
    %p70 = scmp.ne.s32.totalorder %s58, %s59
    %p71 = scmp.eq.s32.totalorder %s14, 1
    %p72 = por %p70, %p71
    %p74 = scmp.ne.s32.totalorder %s59, %s73
    %p75 = scmp.eq.s32.totalorder %s14, 0
    %p76 = por %p74, %p75
    %s77 = ssub.s32 %s15, %s27
    %s78 = ssub.s32 %s16, %s23
    %s79 = sor.u32 %s77, %s78
    %p80 = scmp.eq.s32.totalorder %s79, 0
    %s82 = sadd.s32 %s81, 1
    %s83 = scalar_select %p80, %s81, %s82
    %p86 = pneg %p80
    %p87 = scmp.eq.s32.totalorder %s8, 1
    %p88 = por %p86, %p87
    %p89 = scmp.ne.s32.totalorder %s81, %s84
    %p90 = scmp.eq.s32.totalorder %s8, 0
    %p91 = por %p89, %p90
    %p92 = scmp.ne.s32.totalorder %s81, %s84
    %p93 = scmp.eq.s32.totalorder %s13, 1
    %p94 = por %p92, %p93
    %p95 = scmp.ne.s32.totalorder %s84, %s85
    %p96 = scmp.eq.s32.totalorder %s13, 0
    %p97 = por %p95, %p96
    %p98 = scmp.ne.s32.totalorder %s84, %s85
    %p99 = scmp.eq.s32.totalorder %s14, 1
    %p100 = por %p98, %p99
    %p102 = scmp.ne.s32.totalorder %s85, %s101
    %p103 = scmp.eq.s32.totalorder %s14, 0
    %p104 = por %p102, %p103
    %p105 = scmp.le.s32.totalorder 1, %s8
    %p106 = scmp.lt.s32.totalorder %s8, 3
    %p107 = pnand %p105, %p106
    %p108 = pneg %p107
    // Predicated region
    $region9: #{_lambda_.1} parent=5 // pred_check
      _
    $region10: #{_lambda_.1} parent=5 // pred_check_branch
      %110 = sbr.rel (%p107) target = $region12
    $region11: #{_lambda_.1} parent=5 // pred_region
      %s111 = ssub.s32 %s8, 1
      // Predicated region
      $region13: #{_lambda_.1} parent=11 // pred_check
        %p112 = pneg %p69
      $region14: #{_lambda_.1} parent=11 // pred_check_branch
        %114 = sbr.rel (%p112) target = $region16
      $region15: #{_lambda_.1} parent=11 // pred_region
        _
      $region16: #{_lambda_.1} parent=11 // pred_fallthru
        _
    $region12: #{_lambda_.1} parent=5 // pred_fallthru
      _
    %p115 = scmp.lt.s32.totalorder %s8, 2
    // Predicated region
    $region17: #{_lambda_.1} parent=5 // pred_check
      %p116 = pneg %p115
    $region18: #{_lambda_.1} parent=5 // pred_check_branch
      %118 = sbr.rel (%p116) target = $region20
    $region19: #{_lambda_.1} parent=5 // pred_region
      // Predicated region
      $region21: #{_lambda_.1} parent=19 // pred_check
        %p119 = pneg %p42
      $region22: #{_lambda_.1} parent=19 // pred_check_branch
        %121 = sbr.rel (%p119) target = $region24
      $region23: #{_lambda_.1} parent=19 // pred_region
        %s122 = smul.u32 2, %s16
        %p123 = scmp.lt.s32.totalorder %s15, 1
        %s124 = scalar_select %p123, %s15, 1
        %p125 = scmp.lt.s32.totalorder %s122, 1
        %s126 = scalar_select %p125, %s122, 1
        %s127 = smul.addr %s124, 32
        %s128 = sadd.s32 %s126, %s127
        %s129 = smul.addr %s128, 8
        %s130 = scalar_lea.vmem %s0, %s129
        %s131 = smul.u32 2, %s16
      $region24: #{_lambda_.1} parent=19 // pred_fallthru
        _
    $region20: #{_lambda_.1} parent=5 // pred_fallthru
      _
    %p132 = scmp.le.s32.totalorder 1, %s8
    %p133 = scmp.lt.s32.totalorder %s8, 3
    %p134 = pnand %p132, %p133
    %p135 = pneg %p134
    // Predicated region
    $region25: #{_lambda_.1} parent=5 // pred_check
      _
    $region26: #{_lambda_.1} parent=5 // pred_check_branch
      %137 = sbr.rel (%p134) target = $region28
    $region27: #{_lambda_.1} parent=5 // pred_region
      %s138 = ssub.s32 %s8, 1
      %s139 = smul.u32 2, %s18
      %p140 = scmp.lt.s32.totalorder %s17, 1
      %s141 = scalar_select %p140, %s17, 1
      %p142 = scmp.lt.s32.totalorder %s139, 1
      %s143 = scalar_select %p142, %s139, 1
      %s144 = smul.addr %s141, 32
      %s145 = sadd.s32 %s143, %s144
      %s146 = smul.addr %s145, 8
      %s147 = scalar_lea.vmem %s0, %s146
      %p148 = pneg %p48
      %p149 = pneg %p45
      %p150 = pneg %p69
      %p151 = pneg %p66
      %p152 = pneg %p97
      %p153 = pneg %p94
      %s154 = smul.u32 2, %s18
      %p155 = scmp.lt.s32.totalorder %s17, 1
      %s156 = scalar_select %p155, %s17, 1
      %p157 = scmp.lt.s32.totalorder %s154, 1
      %s158 = scalar_select %p157, %s154, 1
      %s159 = smul.addr %s156, 32
      %s160 = sadd.s32 %s158, %s159
      %s161 = smul.addr %s160, 8
      %s162 = scalar_lea.vmem %s2, %s161
      %s163 = smul.u32 2, %s18
      %p164 = scmp.lt.s32.totalorder %s17, 1
      %s165 = scalar_select %p164, %s17, 1
      %p166 = scmp.lt.s32.totalorder %s163, 1
      %s167 = scalar_select %p166, %s163, 1
      %s168 = smul.addr %s165, 32
      %s169 = sadd.s32 %s167, %s168
      %s170 = smul.addr %s169, 8
      %s171 = scalar_lea.vmem %s0, %s170
      %s172 = smul.u32 2, %s18
      %s173 = smul.u32 2, %s18
      %p174 = scmp.lt.s32.totalorder %s17, 1
      %s175 = scalar_select %p174, %s17, 1
      %p176 = scmp.lt.s32.totalorder %s173, 1
      %s177 = scalar_select %p176, %s173, 1
      %s178 = smul.addr %s175, 32
      %s179 = sadd.s32 %s177, %s178
      %s180 = smul.addr %s179, 8
      %s181 = scalar_lea.vmem %s2, %s180
      %s182 = smul.u32 2, %s18
      %v183 = vld [vmem:[%s1] sm:$0xff]
      %v184 = vld [vmem:[%s1 + $0x8] sm:$0xff]
      %v185 = vld [vmem:[%s1 + $0x10] sm:$0xff]
      %v186 = vld [vmem:[%s1 + $0x18] sm:$0xff]
      %v187 = vld [vmem:[%s1 + $0x20] sm:$0xff]
      %v188 = vld [vmem:[%s1 + $0x28] sm:$0xff]
      %v189 = vld [vmem:[%s1 + $0x30] sm:$0xff]
      %v190 = vld [vmem:[%s1 + $0x38] sm:$0xff]
      %v191 = vld [vmem:[%s1 + $0x40] sm:$0xff]
      %v192 = vld [vmem:[%s1 + $0x48] sm:$0xff]
      %v193 = vld [vmem:[%s1 + $0x50] sm:$0xff]
      %v194 = vld [vmem:[%s1 + $0x58] sm:$0xff]
      %v195 = vld [vmem:[%s1 + $0x60] sm:$0xff]
      %v196 = vld [vmem:[%s1 + $0x68] sm:$0xff]
      %v197 = vld [vmem:[%s1 + $0x70] sm:$0xff]
      %v198 = vld [vmem:[%s1 + $0x78] sm:$0xff]
      %v199 = vld [vmem:[%s171] sm:$0xff]
      %v200 = vld [vmem:[%s171 + $0x8] sm:$0xff]
      %v201 = vld [vmem:[%s171 + $0x10] sm:$0xff]
      %v202 = vld [vmem:[%s171 + $0x18] sm:$0xff]
      %v203 = vld [vmem:[%s171 + $0x20] sm:$0xff]
      %v204 = vld [vmem:[%s171 + $0x28] sm:$0xff]
      %v205 = vld [vmem:[%s171 + $0x30] sm:$0xff]
      %v206 = vld [vmem:[%s171 + $0x38] sm:$0xff]
      %v207 = vld [vmem:[%s171 + $0x40] sm:$0xff]
      %v208 = vld [vmem:[%s171 + $0x48] sm:$0xff]
      %v209 = vld [vmem:[%s171 + $0x50] sm:$0xff]
      %v210 = vld [vmem:[%s171 + $0x58] sm:$0xff]
      %v211 = vld [vmem:[%s171 + $0x60] sm:$0xff]
      %v212 = vld [vmem:[%s171 + $0x68] sm:$0xff]
      %v213 = vld [vmem:[%s171 + $0x70] sm:$0xff]
      %v214 = vld [vmem:[%s171 + $0x78] sm:$0xff]
      %v215 = vld [vmem:[%s171 + $0x80] sm:$0xff]
      %v216 = vld [vmem:[%s171 + $0x88] sm:$0xff]
      %v217 = vld [vmem:[%s171 + $0x90] sm:$0xff]
      %v218 = vld [vmem:[%s171 + $0x98] sm:$0xff]
      %v219 = vld [vmem:[%s171 + $0xa0] sm:$0xff]
      %v220 = vld [vmem:[%s171 + $0xa8] sm:$0xff]
      %v221 = vld [vmem:[%s171 + $0xb0] sm:$0xff]
      %v222 = vld [vmem:[%s171 + $0xb8] sm:$0xff]
      %v223 = vld [vmem:[%s171 + $0xc0] sm:$0xff]
      %v224 = vld [vmem:[%s171 + $0xc8] sm:$0xff]
      %v225 = vld [vmem:[%s171 + $0xd0] sm:$0xff]
      %v226 = vld [vmem:[%s171 + $0xd8] sm:$0xff]
      %v227 = vld [vmem:[%s171 + $0xe0] sm:$0xff]
      %v228 = vld [vmem:[%s171 + $0xe8] sm:$0xff]
      %v229 = vld [vmem:[%s171 + $0xf0] sm:$0xff]
      %v230 = vld [vmem:[%s171 + $0xf8] sm:$0xff]
      %231 = vmatprep.subr.mxu0 %v200
      %232 = vmatpush1.msra.mxu0 %v199
      %233 = vmatprep.subr.mxu0 %v202
      %234 = vmatpush1.msra.mxu0 %v201
      %235 = vmatprep.subr.mxu0 %v204
      %236 = vmatpush1.msra.mxu0 %v203
      %237 = vmatprep.subr.mxu0 %v206
      %238 = vmatpush1.msra.mxu0 %v205
      %239 = vmatprep.subr.mxu0 %v208
      %240 = vmatpush1.msra.mxu0 %v207
      %241 = vmatprep.subr.mxu0 %v210
      %242 = vmatpush1.msra.mxu0 %v209
      %243 = vmatprep.subr.mxu0 %v212
      %244 = vmatpush1.msra.mxu0 %v211
      %245 = vmatprep.subr.mxu0 %v214
      %246 = vmatpush1.msra.mxu0 %v213
      %247 = vmatprep.subr.mxu0 %v216
      %248 = vmatpush1.msra.mxu0 %v215
      %249 = vmatprep.subr.mxu0 %v218
      %250 = vmatpush1.msra.mxu0 %v217
      %251 = vmatprep.subr.mxu0 %v220
      %252 = vmatpush1.msra.mxu0 %v219
      %253 = vmatprep.subr.mxu0 %v222
      %254 = vmatpush1.msra.mxu0 %v221
      %255 = vmatprep.subr.mxu0 %v224
      %256 = vmatpush1.msra.mxu0 %v223
      %257 = vmatprep.subr.mxu0 %v226
      %258 = vmatpush1.msra.mxu0 %v225
      %259 = vmatprep.subr.mxu0 %v228
      %260 = vmatpush1.msra.mxu0 %v227
      %261 = vmatprep.subr.mxu0 %v230
      %262 = vmatpush1.msra.mxu0 %v229
      %263 = vmatprep.subr.mxu0 0.0
      %264 = vmatpush1.msra.mxu0 0.0
      %265 = vmatprep.subr.mxu0 0.0
      %266 = vmatpush1.msra.mxu0 0.0
      %267 = vmatprep.subr.mxu0 0.0
      %268 = vmatpush1.msra.mxu0 0.0
      %269 = vmatprep.subr.mxu0 0.0
      %270 = vmatpush1.msra.mxu0 0.0
      %271 = vmatprep.subr.mxu0 0.0
      %272 = vmatpush1.msra.mxu0 0.0
      %273 = vmatprep.subr.mxu0 0.0
      %274 = vmatpush1.msra.mxu0 0.0
      %275 = vmatprep.subr.mxu0 0.0
      %276 = vmatpush1.msra.mxu0 0.0
      %277 = vmatprep.subr.mxu0 0.0
      %278 = vmatpush1.msra.mxu0 0.0
      %279 = vmatprep.subr.mxu0 0.0
      %280 = vmatpush1.msra.mxu0 0.0
      %281 = vmatprep.subr.mxu0 0.0
      %282 = vmatpush1.msra.mxu0 0.0
      %283 = vmatprep.subr.mxu0 0.0
      %284 = vmatpush1.msra.mxu0 0.0
      %285 = vmatprep.subr.mxu0 0.0
      %286 = vmatpush1.msra.mxu0 0.0
      %287 = vmatprep.subr.mxu0 0.0
      %288 = vmatpush1.msra.mxu0 0.0
      %289 = vmatprep.subr.mxu0 0.0
      %290 = vmatpush1.msra.mxu0 0.0
      %291 = vmatprep.subr.mxu0 0.0
      %292 = vmatpush1.msra.mxu0 0.0
      %293 = vmatprep.subr.mxu0 0.0
      %294 = vmatpush1.msra.mxu0 0.0
      %295 = vmatprep.mubr.f32.mxu0 0.0
      %296 = vmatmul.mubr.f32.gmra.mrb[0].mxu0 %v183
      %v297 = vpop.f32.mrb[0].mxu0
      %v298 = vadd.f32 0.0, %v297
      %v299 = vpop.f32.mrb[0].mxu0
      %v300 = vadd.f32 0.0, %v299
      %301 = vmatprep.mubr.f32.mxu0 0.0
      %302 = vmatmul.mubr.f32.gmra.mrb[0].mxu0 %v184
      %v303 = vpop.f32.mrb[0].mxu0
      %v304 = vadd.f32 0.0, %v303
      %v305 = vpop.f32.mrb[0].mxu0
      %v306 = vadd.f32 0.0, %v305
      %307 = vmatprep.mubr.f32.mxu0 0.0
      %308 = vmatmul.mubr.f32.gmra.mrb[0].mxu0 %v185
      %v309 = vpop.f32.mrb[0].mxu0
      %v310 = vadd.f32 0.0, %v309
      %v311 = vpop.f32.mrb[0].mxu0
      %v312 = vadd.f32 0.0, %v311
      %313 = vmatprep.mubr.f32.mxu0 0.0
      %314 = vmatmul.mubr.f32.gmra.mrb[0].mxu0 %v186
      %v315 = vpop.f32.mrb[0].mxu0
      %v316 = vadd.f32 0.0, %v315
      %v317 = vpop.f32.mrb[0].mxu0
      %v318 = vadd.f32 0.0, %v317
      %319 = vmatprep.mubr.f32.mxu0 0.0
      %320 = vmatmul.mubr.f32.gmra.mrb[0].mxu0 %v187
      %v321 = vpop.f32.mrb[0].mxu0
      %v322 = vadd.f32 0.0, %v321
      %v323 = vpop.f32.mrb[0].mxu0
      %v324 = vadd.f32 0.0, %v323
      %325 = vmatprep.mubr.f32.mxu0 0.0
      %326 = vmatmul.mubr.f32.gmra.mrb[0].mxu0 %v188
      %v327 = vpop.f32.mrb[0].mxu0
      %v328 = vadd.f32 0.0, %v327
      %v329 = vpop.f32.mrb[0].mxu0
      %v330 = vadd.f32 0.0, %v329
      %331 = vmatprep.mubr.f32.mxu0 0.0
      %332 = vmatmul.mubr.f32.gmra.mrb[0].mxu0 %v189
      %v333 = vpop.f32.mrb[0].mxu0
      %v334 = vadd.f32 0.0, %v333
      %v335 = vpop.f32.mrb[0].mxu0
      %v336 = vadd.f32 0.0, %v335
      %337 = vmatprep.mubr.f32.mxu0 0.0
      %338 = vmatmul.mubr.f32.gmra.mrb[0].mxu0 %v190
      %v339 = vpop.f32.mrb[0].mxu0
      %v340 = vadd.f32 0.0, %v339
      %v341 = vpop.f32.mrb[0].mxu0
      %v342 = vadd.f32 0.0, %v341
      %343 = vmatprep.mubr.f32.mxu0 0.0
      %344 = vmatmul.mubr.f32.gmra.mrb[0].mxu0 %v191
      %v345 = vpop.f32.mrb[0].mxu0
      %v346 = vadd.f32 0.0, %v345
      %v347 = vpop.f32.mrb[0].mxu0
      %v348 = vadd.f32 0.0, %v347
      %349 = vmatprep.mubr.f32.mxu0 0.0
      %350 = vmatmul.mubr.f32.gmra.mrb[0].mxu0 %v192
      %v351 = vpop.f32.mrb[0].mxu0
      %v352 = vadd.f32 0.0, %v351
      %v353 = vpop.f32.mrb[0].mxu0
      %v354 = vadd.f32 0.0, %v353
      %355 = vmatprep.mubr.f32.mxu0 0.0
      %356 = vmatmul.mubr.f32.gmra.mrb[0].mxu0 %v193
      %v357 = vpop.f32.mrb[0].mxu0
      %v358 = vadd.f32 0.0, %v357
      %v359 = vpop.f32.mrb[0].mxu0
      %v360 = vadd.f32 0.0, %v359
      %361 = vmatprep.mubr.f32.mxu0 0.0
      %362 = vmatmul.mubr.f32.gmra.mrb[0].mxu0 %v194
      %v363 = vpop.f32.mrb[0].mxu0
      %v364 = vadd.f32 0.0, %v363
      %v365 = vpop.f32.mrb[0].mxu0
      %v366 = vadd.f32 0.0, %v365
      %367 = vmatprep.mubr.f32.mxu0 0.0
      %368 = vmatmul.mubr.f32.gmra.mrb[0].mxu0 %v195
      %v369 = vpop.f32.mrb[0].mxu0
      %v370 = vadd.f32 0.0, %v369
      %v371 = vpop.f32.mrb[0].mxu0
      %v372 = vadd.f32 0.0, %v371
      %373 = vmatprep.mubr.f32.mxu0 0.0
      %374 = vmatmul.mubr.f32.gmra.mrb[0].mxu0 %v196
      %v375 = vpop.f32.mrb[0].mxu0
      %v376 = vadd.f32 0.0, %v375
      %v377 = vpop.f32.mrb[0].mxu0
      %v378 = vadd.f32 0.0, %v377
      %379 = vmatprep.mubr.f32.mxu0 0.0
      %380 = vmatmul.mubr.f32.gmra.mrb[0].mxu0 %v197
      %v381 = vpop.f32.mrb[0].mxu0
      %v382 = vadd.f32 0.0, %v381
      %v383 = vpop.f32.mrb[0].mxu0
      %v384 = vadd.f32 0.0, %v383
      %385 = vmatprep.mubr.f32.mxu0 0.0
      %386 = vmatmul.mubr.f32.gmra.mrb[0].mxu0 %v198
      %v387 = vpop.f32.mrb[0].mxu0
      %v388 = vadd.f32 0.0, %v387
      %v389 = vpop.f32.mrb[0].mxu0
      %v390 = vadd.f32 0.0, %v389
      %391 = vdwg.mxu0
      %392 = vst [vmem:[%s181] sm:$0xff] %v298
      %393 = vst [vmem:[%s181 + $0x8] sm:$0xff] %v300
      %394 = vst [vmem:[%s181 + $0x10] sm:$0xff] %v304
      %395 = vst [vmem:[%s181 + $0x18] sm:$0xff] %v306
      %396 = vst [vmem:[%s181 + $0x20] sm:$0xff] %v310
      %397 = vst [vmem:[%s181 + $0x28] sm:$0xff] %v312
      %398 = vst [vmem:[%s181 + $0x30] sm:$0xff] %v316
      %399 = vst [vmem:[%s181 + $0x38] sm:$0xff] %v318
      %400 = vst [vmem:[%s181 + $0x40] sm:$0xff] %v322
      %401 = vst [vmem:[%s181 + $0x48] sm:$0xff] %v324
      %402 = vst [vmem:[%s181 + $0x50] sm:$0xff] %v328
      %403 = vst [vmem:[%s181 + $0x58] sm:$0xff] %v330
      %404 = vst [vmem:[%s181 + $0x60] sm:$0xff] %v334
      %405 = vst [vmem:[%s181 + $0x68] sm:$0xff] %v336
      %406 = vst [vmem:[%s181 + $0x70] sm:$0xff] %v340
      %407 = vst [vmem:[%s181 + $0x78] sm:$0xff] %v342
      %408 = vst [vmem:[%s181 + $0x80] sm:$0xff] %v346
      %409 = vst [vmem:[%s181 + $0x88] sm:$0xff] %v348
      %410 = vst [vmem:[%s181 + $0x90] sm:$0xff] %v352
      %411 = vst [vmem:[%s181 + $0x98] sm:$0xff] %v354
      %412 = vst [vmem:[%s181 + $0xa0] sm:$0xff] %v358
      %413 = vst [vmem:[%s181 + $0xa8] sm:$0xff] %v360
      %414 = vst [vmem:[%s181 + $0xb0] sm:$0xff] %v364
      %415 = vst [vmem:[%s181 + $0xb8] sm:$0xff] %v366
      %416 = vst [vmem:[%s181 + $0xc0] sm:$0xff] %v370
      %417 = vst [vmem:[%s181 + $0xc8] sm:$0xff] %v372
      %418 = vst [vmem:[%s181 + $0xd0] sm:$0xff] %v376
      %419 = vst [vmem:[%s181 + $0xd8] sm:$0xff] %v378
      %420 = vst [vmem:[%s181 + $0xe0] sm:$0xff] %v382
      %421 = vst [vmem:[%s181 + $0xe8] sm:$0xff] %v384
      %422 = vst [vmem:[%s181 + $0xf0] sm:$0xff] %v388
      %423 = vst [vmem:[%s181 + $0xf8] sm:$0xff] %v390
      %s424 = smul.u32 2, %s18
      %p425 = scmp.lt.s32.totalorder %s17, 1
      %s426 = scalar_select %p425, %s17, 1
      %p427 = scmp.lt.s32.totalorder %s424, 1
      %s428 = scalar_select %p427, %s424, 1
      %s429 = smul.addr %s426, 32
      %s430 = sadd.s32 %s428, %s429
      %s431 = smul.addr %s430, 8
      %s432 = scalar_lea.vmem %s2, %s431
      // Predicated region
      $region29: #{_lambda_.1} parent=27 // pred_check
        %p433 = pneg %p94
      $region30: #{_lambda_.1} parent=27 // pred_check_branch
        %435 = sbr.rel (%p433) target = $region32
      $region31: #{_lambda_.1} parent=27 // pred_region
        %s436 = smul.u32 2, %s18
      $region32: #{_lambda_.1} parent=27 // pred_fallthru
        _
    $region28: #{_lambda_.1} parent=5 // pred_fallthru
      _
    %p437 = scmp.le.s32.totalorder 2, %s8
    // Predicated region
    $region33: #{_lambda_.1} parent=5 // pred_check
      %p438 = pneg %p437
    $region34: #{_lambda_.1} parent=5 // pred_check_branch
      %440 = sbr.rel (%p438) target = $region36
    $region35: #{_lambda_.1} parent=5 // pred_region
      %s441 = ssub.s32 %s8, 2
      // Predicated region
      $region37: #{_lambda_.1} parent=35 // pred_check
        %p442 = pneg %p100
      $region38: #{_lambda_.1} parent=35 // pred_check_branch
        %444 = sbr.rel (%p442) target = $region40
      $region39: #{_lambda_.1} parent=35 // pred_region
        %s445 = smul.u32 2, %s20
        %p446 = scmp.lt.s32.totalorder %s19, 1
        %s447 = scalar_select %p446, %s19, 1
        %p448 = scmp.lt.s32.totalorder %s445, 1
        %s449 = scalar_select %p448, %s445, 1
        %s450 = smul.addr %s447, 32
        %s451 = sadd.s32 %s449, %s450
        %s452 = smul.addr %s451, 8
        %s453 = scalar_lea.vmem %s2, %s452
      $region40: #{_lambda_.1} parent=35 // pred_fallthru
        _
    $region36: #{_lambda_.1} parent=5 // pred_fallthru
      _
  $region6: #{_lambda_.1} parent=0 // loop_footer
    %s12 = sadd.s32 1, %s8
  $region7: #{_lambda_.1} parent=0 // loop_footer_branch
    %7 = sbr.rel target = $region3
  $region8: #{_lambda_.1} parent=0 // loop_exit
    _

</llo_original>
